<compile_context>
chip_gen: v6e
topology: v6e:2x2x1
jax: 0.10.0
libtpu: 0.0.40
codegen_flags: <defaults>
</compile_context>

<pallas_src>
import jax
import jax.numpy as jnp
from jax.experimental import pallas as pl
from jax.experimental.pallas import tpu as pltpu

IN = 784      # flattened 28x28 input (do NOT pad to 896 -- extra HBM read)
H1 = 128      # hidden-1 width (already lane aligned)
H2P = 128     # hidden-2 width padded 64 -> 128 (exact: ReLU(0 + 0) = 0)
OUT = 10      # true logits width
OUT_P = 16    # logits width padded 10 -> 16 (small contiguous HBM writeback)


def _round_up(n, m):
    return ((n + m - 1) // m) * m


def mlp_kernel(x_ref, w1_ref, b1_ref, w2_ref, b2_ref, w3_ref, b3_ref, out_ref):
    # bf16 MXU operands, f32 accumulation, f32 epilogue (bias + ReLU).
    x = x_ref[...].astype(jnp.bfloat16)

    h1 = jnp.dot(x, w1_ref[...], preferred_element_type=jnp.float32)
    h1 = jnp.maximum(h1 + b1_ref[...], 0.0)

    h2 = jnp.dot(h1.astype(jnp.bfloat16), w2_ref[...],
                 preferred_element_type=jnp.float32)
    h2 = jnp.maximum(h2 + b2_ref[...], 0.0)

    out = jnp.dot(h2.astype(jnp.bfloat16), w3_ref[...],
                  preferred_element_type=jnp.float32)
    out_ref[...] = (out + b3_ref[...]).astype(out_ref.dtype)


def mlp_forward(x_nchw, params, *, block_b=1024):
    """x_nchw: (B, 1, 28, 28) float32. Returns (B, 10) float32 logits."""
    b = x_nchw.shape[0]
    x = x_nchw.reshape(b, -1).astype(jnp.float32)          # torch.flatten(x, 1)
    w1, b1, w2, b2, w3, b3 = params

    # Zero-pad layer2/layer3 to friendly widths. Exact: ReLU(0 + 0) = 0 for the
    # padded hidden units, and the padded W3 rows/cols are zero.
    w2p = jnp.zeros((H1, H2P), jnp.float32).at[:, :64].set(w2)
    b2p = jnp.zeros((1, H2P), jnp.float32).at[:, :64].set(b2)
    w3p = jnp.zeros((H2P, OUT_P), jnp.float32).at[:64, :OUT].set(w3)
    b3p = jnp.zeros((1, OUT_P), jnp.float32).at[:, :OUT].set(b3)

    # bf16 matmul operands (halves resident-weight bytes); biases stay f32.
    w1b = w1.astype(jnp.bfloat16)
    w2b = w2p.astype(jnp.bfloat16)
    w3b = w3p.astype(jnp.bfloat16)
    b1f = b1.astype(jnp.float32)

    # --- Batch padding / tile selection -------------------------------------
    # Pad B only to a multiple of 8 (sublane); never to a multiple of the tile.
    b_pad = _round_up(b, 8)
    if b_pad != b:
        x = jnp.pad(x, ((0, b_pad - b), (0, 0)))

    # Largest tb (multiple of 8) that divides b_pad, capped by block_b and by
    # ceil(b_pad/2) so the grid has >= 2 steps (lets v7x use both TensorCores).
    block_b = max(8, (block_b // 8) * 8)
    tb_max = min(block_b, _round_up(pl.cdiv(b_pad, 2), 8), b_pad)
    tb = 8
    for cand in range(tb_max, 7, -8):
        if b_pad % cand == 0:
            tb = cand
            break
    grid = (b_pad // tb,)

    def wspec(shape):
        return pl.BlockSpec(shape, lambda i: (0, 0))

    weight_bytes = (w1b.size * 2 + w2b.size * 2 + w3b.size * 2
                    + (b1f.size + b2p.size + b3p.size) * 4)
    # Explicit VMEM budget: double-buffered x/out tiles + resident weights +
    # headroom for h1/h2 intermediates. Clamped to be safe on every generation.
    vmem_limit = int(2 * tb * IN * 4
                     + 2 * tb * OUT_P * 4
                     + 2 * weight_bytes
                     + 6 * tb * H1 * 4
                     + (2 << 20))
    vmem_limit = min(max(vmem_limit, 16 << 20), 40 << 20)

    flops = 2 * b_pad * (IN * H1 + H1 * H2P + H2P * OUT_P)
    bytes_accessed = (b_pad * IN * 4 + weight_bytes + b_pad * OUT_P * 4)

    out = pl.pallas_call(
        mlp_kernel,
        out_shape=jax.ShapeDtypeStruct((b_pad, OUT_P), jnp.float32),
        grid=grid,
        in_specs=[
            pl.BlockSpec((tb, IN), lambda i: (i, 0)),   # streamed x tiles
            wspec((IN, H1)), wspec((1, H1)),            # layer1 (resident)
            wspec((H1, H2P)), wspec((1, H2P)),          # layer2 (resident)
            wspec((H2P, OUT_P)), wspec((1, OUT_P)),     # layer3 (resident)
        ],
        out_specs=pl.BlockSpec((tb, OUT_P), lambda i: (i, 0)),
        compiler_params=pltpu.CompilerParams(
            dimension_semantics=("parallel",),
            vmem_limit_bytes=vmem_limit),
        cost_estimate=pl.CostEstimate(
            flops=flops, bytes_accessed=bytes_accessed, transcendentals=0),
    )(x, w1b, b1f, w2b, b2p, w3b, b3p)

    return out[:b, :OUT]


def init_params(key):
    """Deterministic init matching nn.Linear shapes (stored as (in, out))."""
    sizes = [(784, 128), (128, 64), (64, 10)]
    params = []
    for i, (fan_in, fan_out) in enumerate(sizes):
        kw, kb = jax.random.split(jax.random.fold_in(key, i))
        bound = 1.0 / jnp.sqrt(fan_in)
        w = jax.random.uniform(kw, (fan_in, fan_out), jnp.float32, -bound, bound)
        bias = jax.random.uniform(kb, (1, fan_out), jnp.float32, -bound, bound)
        params += [w, bias]
    return tuple(params)


def _reference_forward(x_nchw, params):
    """Pure-JAX f32 reference matching the PyTorch module."""
    w1, b1, w2, b2, w3, b3 = params
    x = x_nchw.reshape(x_nchw.shape[0], -1)
    h1 = jnp.maximum(x @ w1 + b1, 0.0)
    h2 = jnp.maximum(h1 @ w2 + b2, 0.0)
    return h2 @ w3 + b3


if __name__ == "__main__":
    key = jax.random.PRNGKey(0)
    params = init_params(key)

    # Small MNIST-shaped batch: (B, 1, 28, 28) NCHW, flattened to 784 features.
    # B=10 exercises batch padding (10 -> 16) and a 2-step grid.
    x = jax.random.normal(jax.random.fold_in(key, 100), (10, 1, 28, 28),
                          jnp.float32)

    logits = mlp_forward(x, params)
    jax.block_until_ready(logits)
    assert logits.shape == (10, 10) and logits.dtype == jnp.float32

    # bf16 matmul operands => compare to f32 reference with a loose tolerance.
    ref = _reference_forward(x, params)
    assert jnp.allclose(logits, ref, rtol=5e-2, atol=5e-2)

    print("KERNEL_OK")
</pallas_src>

<mosaic_0001>
module attributes {stable_mosaic.version = 11 : i64} {
  func.func @mlp_kernel(%arg0: i32, %arg1: memref<8x784xf32, #tpu.memory_space<vmem>>, %arg2: memref<784x128xbf16, #tpu.memory_space<vmem>>, %arg3: memref<1x128xf32, #tpu.memory_space<vmem>>, %arg4: memref<128x128xbf16, #tpu.memory_space<vmem>>, %arg5: memref<1x128xf32, #tpu.memory_space<vmem>>, %arg6: memref<128x16xbf16, #tpu.memory_space<vmem>>, %arg7: memref<1x16xf32, #tpu.memory_space<vmem>>, %arg8: memref<8x16xf32, #tpu.memory_space<vmem>>) attributes {dimension_semantics = [#tpu.dimension_semantics<parallel>], iteration_bounds = array<i64: 2>, scalar_prefetch = 0 : i64, scratch_operands = 0 : i64, tpu.core_type = #tpu.core_type<tc>, window_params = [{transform_indices = @transform_0, window_bounds = array<i64: 8, 784>}, {pipeline_mode = #tpu.pipeline_mode<synchronous>, transform_indices = @transform_1, window_bounds = array<i64: 784, 128>}, {pipeline_mode = #tpu.pipeline_mode<synchronous>, transform_indices = @transform_2, window_bounds = array<i64: 1, 128>}, {pipeline_mode = #tpu.pipeline_mode<synchronous>, transform_indices = @transform_3, window_bounds = array<i64: 128, 128>}, {pipeline_mode = #tpu.pipeline_mode<synchronous>, transform_indices = @transform_4, window_bounds = array<i64: 1, 128>}, {pipeline_mode = #tpu.pipeline_mode<synchronous>, transform_indices = @transform_5, window_bounds = array<i64: 128, 16>}, {pipeline_mode = #tpu.pipeline_mode<synchronous>, transform_indices = @transform_6, window_bounds = array<i64: 1, 16>}, {transform_indices = @transform_7, window_bounds = array<i64: 8, 16>}]} {
    %c0 = arith.constant 0 : index
    %c0_0 = arith.constant 0 : index
    %0 = vector.load %arg1[%c0, %c0_0] : memref<8x784xf32, #tpu.memory_space<vmem>>, vector<8x784xf32>
    %1 = arith.truncf %0 : vector<8x784xf32> to vector<8x784xbf16>
    %c0_1 = arith.constant 0 : index
    %c0_2 = arith.constant 0 : index
    %2 = vector.load %arg2[%c0_1, %c0_2] : memref<784x128xbf16, #tpu.memory_space<vmem>>, vector<784x128xbf16>
    %cst = arith.constant dense<0.000000e+00> : vector<8x128xf32>
    %3 = tpu.matmul %1, %2, %cst {dimension_numbers = #tpu.dot_dimension_numbers<[1], [0], [0], [1], [0, 0, 1, 1], [], []>} : vector<8x784xbf16>, vector<784x128xbf16>, vector<8x128xf32> -> vector<8x128xf32>
    %c0_3 = arith.constant 0 : index
    %c0_4 = arith.constant 0 : index
    %4 = vector.load %arg3[%c0_3, %c0_4] : memref<1x128xf32, #tpu.memory_space<vmem>>, vector<1x128xf32>
    %5 = vector.broadcast %4 : vector<1x128xf32> to vector<8x128xf32>
    %6 = arith.addf %3, %5 : vector<8x128xf32>
    %cst_5 = arith.constant 0.000000e+00 : f32
    %7 = vector.broadcast %cst_5 : f32 to vector<8x128xf32>
    %8 = arith.maximumf %6, %7 : vector<8x128xf32>
    %9 = arith.truncf %8 : vector<8x128xf32> to vector<8x128xbf16>
    %c0_6 = arith.constant 0 : index
    %c0_7 = arith.constant 0 : index
    %10 = vector.load %arg4[%c0_6, %c0_7] : memref<128x128xbf16, #tpu.memory_space<vmem>>, vector<128x128xbf16>
    %cst_8 = arith.constant dense<0.000000e+00> : vector<8x128xf32>
    %11 = tpu.matmul %9, %10, %cst_8 {dimension_numbers = #tpu.dot_dimension_numbers<[1], [0], [0], [1], [0, 0, 1, 1], [], []>} : vector<8x128xbf16>, vector<128x128xbf16>, vector<8x128xf32> -> vector<8x128xf32>
    %c0_9 = arith.constant 0 : index
    %c0_10 = arith.constant 0 : index
    %12 = vector.load %arg5[%c0_9, %c0_10] : memref<1x128xf32, #tpu.memory_space<vmem>>, vector<1x128xf32>
    %13 = vector.broadcast %12 : vector<1x128xf32> to vector<8x128xf32>
    %14 = arith.addf %11, %13 : vector<8x128xf32>
    %cst_11 = arith.constant 0.000000e+00 : f32
    %15 = vector.broadcast %cst_11 : f32 to vector<8x128xf32>
    %16 = arith.maximumf %14, %15 : vector<8x128xf32>
    %17 = arith.truncf %16 : vector<8x128xf32> to vector<8x128xbf16>
    %c0_12 = arith.constant 0 : index
    %c0_13 = arith.constant 0 : index
    %18 = vector.load %arg6[%c0_12, %c0_13] : memref<128x16xbf16, #tpu.memory_space<vmem>>, vector<128x16xbf16>
    %cst_14 = arith.constant dense<0.000000e+00> : vector<8x16xf32>
    %19 = tpu.matmul %17, %18, %cst_14 {dimension_numbers = #tpu.dot_dimension_numbers<[1], [0], [0], [1], [0, 0, 1, 1], [], []>} : vector<8x128xbf16>, vector<128x16xbf16>, vector<8x16xf32> -> vector<8x16xf32>
    %c0_15 = arith.constant 0 : index
    %c0_16 = arith.constant 0 : index
    %20 = vector.load %arg7[%c0_15, %c0_16] : memref<1x16xf32, #tpu.memory_space<vmem>>, vector<1x16xf32>
    %21 = vector.broadcast %20 : vector<1x16xf32> to vector<8x16xf32>
    %22 = arith.addf %19, %21 : vector<8x16xf32>
    %c0_17 = arith.constant 0 : index
    %c0_18 = arith.constant 0 : index
    %23 = vector.load %arg8[%c0_17, %c0_18] : memref<8x16xf32, #tpu.memory_space<vmem>>, vector<8x16xf32>
    tpu.vector_store %arg8[%c0_17, %c0_18], %22 {strides = array<i32>} : memref<8x16xf32, #tpu.memory_space<vmem>>, vector<8x16xf32>,
    return
  }
  func.func @transform_0(%arg0: i32) -> (i32, i32) {
    %c0_i32 = arith.constant 0 : i32
    %c0_i32_0 = arith.constant 0 : i32
    return %arg0, %c0_i32 : i32, i32
  }
  func.func @transform_1(%arg0: i32) -> (i32, i32) {
    %c0_i32 = arith.constant 0 : i32
    %c0_i32_0 = arith.constant 0 : i32
    %c0_i32_1 = arith.constant 0 : i32
    return %c0_i32, %c0_i32_0 : i32, i32
  }
  func.func @transform_2(%arg0: i32) -> (i32, i32) {
    %c0_i32 = arith.constant 0 : i32
    %c0_i32_0 = arith.constant 0 : i32
    %c0_i32_1 = arith.constant 0 : i32
    return %c0_i32, %c0_i32_0 : i32, i32
  }
  func.func @transform_3(%arg0: i32) -> (i32, i32) {
    %c0_i32 = arith.constant 0 : i32
    %c0_i32_0 = arith.constant 0 : i32
    %c0_i32_1 = arith.constant 0 : i32
    return %c0_i32, %c0_i32_0 : i32, i32
  }
  func.func @transform_4(%arg0: i32) -> (i32, i32) {
    %c0_i32 = arith.constant 0 : i32
    %c0_i32_0 = arith.constant 0 : i32
    %c0_i32_1 = arith.constant 0 : i32
    return %c0_i32, %c0_i32_0 : i32, i32
  }
  func.func @transform_5(%arg0: i32) -> (i32, i32) {
    %c0_i32 = arith.constant 0 : i32
    %c0_i32_0 = arith.constant 0 : i32
    %c0_i32_1 = arith.constant 0 : i32
    return %c0_i32, %c0_i32_0 : i32, i32
  }
  func.func @transform_6(%arg0: i32) -> (i32, i32) {
    %c0_i32 = arith.constant 0 : i32
    %c0_i32_0 = arith.constant 0 : i32
    %c0_i32_1 = arith.constant 0 : i32
    return %c0_i32, %c0_i32_0 : i32, i32
  }
  func.func @transform_7(%arg0: i32) -> (i32, i32) {
    %c0_i32 = arith.constant 0 : i32
    %c0_i32_0 = arith.constant 0 : i32
    return %arg0, %c0_i32 : i32, i32
  }
}

</mosaic_0001>

<llo_original>
// kernel: tpu_custom_call.1
$region0: #{tpu_custom_call.1}
  #allocation0 [shape = 'u32[]', space=smem, size = 0x4, offset = 0x4, fixed_abs, tag = 'smem constant byte address 0x4 - core index']
  #allocation1 [shape = 'u32[144,128]{1,0:T(1,128)}', space=vmem, size = 0x12000, scoped, tag = 'internal scratch']
  %s0 = inlined_call_operand.hbm [shape: f32[16,784], index: 0, kind: input, shape index: {}]
  %s1 = inlined_call_operand.hbm [shape: bf16[784,128], index: 1, kind: input, shape index: {}]
  %s2 = inlined_call_operand.vmem [shape: f32[1,128], index: 2, kind: input, shape index: {}]
  %s3 = inlined_call_operand.vmem [shape: bf16[128,128], index: 3, kind: input, shape index: {}]
  %s4 = inlined_call_operand.vmem [shape: f32[1,128], index: 4, kind: input, shape index: {}]
  %s5 = inlined_call_operand.vmem [shape: bf16[128,16], index: 5, kind: input, shape index: {}]
  %s6 = inlined_call_operand.vmem [shape: f32[1,16], index: 6, kind: input, shape index: {}]
  %s7 = inlined_call_operand.hbm [shape: f32[16,16], index: 7, kind: output, shape index: {}]
  %s8 = sld [smem:[#allocation0]]
  $region69: #{tpu_custom_call.1} parent=0
    _
  %s10 = ssub.s32 1, %s8
  %s11 = scalar_select 0, %s10, %s8
  $region1: #{tpu_custom_call.1} parent=0
    #allocation2 [shape = 'u8[57344]{0}', space=vmem, size = 0xe000, scoped, tag = 'input window, operand 0']
    #allocation3 [shape = 's32[2]{0}', space=sflag, size = 0x8, scoped, tag = 'scoped memory for tpu_custom_call.1']
    #allocation4 [shape = 's32[2]{0}', space=sflag, size = 0x8, scoped, tag = 'scoped memory for tpu_custom_call.1']
    #allocation5 [shape = 'u8[200704]{0}', space=vmem, size = 0x31000, scoped, tag = 'input window, operand 1, single buffered']
    #allocation6 [shape = 's32[1]{0}', space=sflag, size = 0x4, scoped, tag = 'scoped memory for tpu_custom_call.1']
    #allocation7 [shape = 'u8[8192]{0}', space=vmem, size = 0x2000, scoped, tag = 'output window, operand 0']
    %12 = vsyncpa [#allocation3], 0
    %s13 = scalar_lea.sflag [#allocation3], 1
    %14 = vsyncpa %s13, 0
    %15 = vsyncpa [#allocation6], 0
    %16 = vsyncpa [#allocation4], 0
    %s17 = scalar_lea.sflag [#allocation4], 1
    %18 = vsyncpa %s17, 0
    loop: start=0, step=1, limit=4
    $region2: #{tpu_custom_call.1} parent=1 // loop_pre_header
      _
    $region3: #{tpu_custom_call.1} parent=1 // loop_header
      %s20 = sphi 0, %s24
      %p21 = scmp.ge.s32.totalorder %s20, 4
      %s30 = sphi 0, %s32
      %s33 = sphi 0, %s30
      %s34 = sphi 0, %s33
      %s50 = sphi 0, %s34
      %s54 = sphi 0, %s54
      %s56 = sphi 0, %s54
      %s57 = sphi 0, %s56
      %s71 = sphi 0, %s57
      %s75 = sphi 0, %s75
      %s77 = sphi 0, %s75
      %s78 = sphi 0, %s77
      %s92 = sphi 0, %s78
      %s96 = sphi 0, %s96
      %s98 = sphi 0, %s96
      %s99 = sphi 0, %s98
      %s113 = sphi 0, %s99
      %s117 = sphi 0, %s117
      %s119 = sphi 0, %s117
      %s120 = sphi 0, %s119
      %s134 = sphi 0, %s120
      %s138 = sphi 0, %s138
      %s140 = sphi 0, %s138
      %s141 = sphi 0, %s140
      %s155 = sphi 0, %s141
      %s159 = sphi 0, %s159
      %s161 = sphi 0, %s159
      %s162 = sphi 0, %s161
      %s176 = sphi 0, %s162
      %s182 = sphi 0, %s184
      %s185 = sphi 0, %s182
      %s186 = sphi 0, %s185
      %s202 = sphi 0, %s186
    $region4: #{tpu_custom_call.1} parent=1 // loop_header_branch
      %23 = sbr.rel (%p21) target = $region8
    $region5: #{tpu_custom_call.1} parent=1 // loop_body
      %s25 = ssub.s32 %s20, 1
      %s26 = ssub.s32 %s20, 2
      %s27 = sadd.s32 %s20, 1
      %s28 = ssub.s32 %s20, %s27
      %p29 = scmp.eq.s32.totalorder %s28, 0
      %s31 = sadd.s32 %s30, 1
      %s32 = scalar_select %p29, %s30, %s31
      %p35 = pneg %p29
      %p36 = scmp.eq.s32.totalorder %s20, 1
      %p37 = por %p35, %p36
      %p38 = scmp.ne.s32.totalorder %s30, %s33
      %p39 = scmp.eq.s32.totalorder %s20, 0
      %p40 = por %p38, %p39
      %p41 = scmp.ne.s32.totalorder %s30, %s33
      %p42 = scmp.eq.s32.totalorder %s25, 1
      %p43 = por %p41, %p42
      %p44 = scmp.ne.s32.totalorder %s33, %s34
      %p45 = scmp.eq.s32.totalorder %s25, 0
      %p46 = por %p44, %p45
      %p47 = scmp.ne.s32.totalorder %s33, %s34
      %p48 = scmp.eq.s32.totalorder %s26, 1
      %p49 = por %p47, %p48
      %p51 = scmp.ne.s32.totalorder %s34, %s50
      %p52 = scmp.eq.s32.totalorder %s26, 0
      %p53 = por %p51, %p52
      %s55 = sadd.s32 %s54, 1
      %p58 = scmp.eq.s32.totalorder %s20, 1
      %p59 = scmp.ne.s32.totalorder %s54, %s56
      %p60 = scmp.eq.s32.totalorder %s20, 0
      %p61 = por %p59, %p60
      %p62 = scmp.ne.s32.totalorder %s54, %s56
      %p63 = scmp.eq.s32.totalorder %s25, 1
      %p64 = por %p62, %p63
      %p65 = scmp.ne.s32.totalorder %s56, %s57
      %p66 = scmp.eq.s32.totalorder %s25, 0
      %p67 = por %p65, %p66
      %p68 = scmp.ne.s32.totalorder %s56, %s57
      %p69 = scmp.eq.s32.totalorder %s26, 1
      %p70 = por %p68, %p69
      %p72 = scmp.ne.s32.totalorder %s57, %s71
      %p73 = scmp.eq.s32.totalorder %s26, 0
      %p74 = por %p72, %p73
      %s76 = sadd.s32 %s75, 1
      %p79 = scmp.eq.s32.totalorder %s20, 1
      %p80 = scmp.ne.s32.totalorder %s75, %s77
      %p81 = scmp.eq.s32.totalorder %s20, 0
      %p82 = por %p80, %p81
      %p83 = scmp.ne.s32.totalorder %s75, %s77
      %p84 = scmp.eq.s32.totalorder %s25, 1
      %p85 = por %p83, %p84
      %p86 = scmp.ne.s32.totalorder %s77, %s78
      %p87 = scmp.eq.s32.totalorder %s25, 0
      %p88 = por %p86, %p87
      %p89 = scmp.ne.s32.totalorder %s77, %s78
      %p90 = scmp.eq.s32.totalorder %s26, 1
      %p91 = por %p89, %p90
      %p93 = scmp.ne.s32.totalorder %s78, %s92
      %p94 = scmp.eq.s32.totalorder %s26, 0
      %p95 = por %p93, %p94
      %s97 = sadd.s32 %s96, 1
      %p100 = scmp.eq.s32.totalorder %s20, 1
      %p101 = scmp.ne.s32.totalorder %s96, %s98
      %p102 = scmp.eq.s32.totalorder %s20, 0
      %p103 = por %p101, %p102
      %p104 = scmp.ne.s32.totalorder %s96, %s98
      %p105 = scmp.eq.s32.totalorder %s25, 1
      %p106 = por %p104, %p105
      %p107 = scmp.ne.s32.totalorder %s98, %s99
      %p108 = scmp.eq.s32.totalorder %s25, 0
      %p109 = por %p107, %p108
      %p110 = scmp.ne.s32.totalorder %s98, %s99
      %p111 = scmp.eq.s32.totalorder %s26, 1
      %p112 = por %p110, %p111
      %p114 = scmp.ne.s32.totalorder %s99, %s113
      %p115 = scmp.eq.s32.totalorder %s26, 0
      %p116 = por %p114, %p115
      %s118 = sadd.s32 %s117, 1
      %p121 = scmp.eq.s32.totalorder %s20, 1
      %p122 = scmp.ne.s32.totalorder %s117, %s119
      %p123 = scmp.eq.s32.totalorder %s20, 0
      %p124 = por %p122, %p123
      %p125 = scmp.ne.s32.totalorder %s117, %s119
      %p126 = scmp.eq.s32.totalorder %s25, 1
      %p127 = por %p125, %p126
      %p128 = scmp.ne.s32.totalorder %s119, %s120
      %p129 = scmp.eq.s32.totalorder %s25, 0
      %p130 = por %p128, %p129
      %p131 = scmp.ne.s32.totalorder %s119, %s120
      %p132 = scmp.eq.s32.totalorder %s26, 1
      %p133 = por %p131, %p132
      %p135 = scmp.ne.s32.totalorder %s120, %s134
      %p136 = scmp.eq.s32.totalorder %s26, 0
      %p137 = por %p135, %p136
      %s139 = sadd.s32 %s138, 1
      %p142 = scmp.eq.s32.totalorder %s20, 1
      %p143 = scmp.ne.s32.totalorder %s138, %s140
      %p144 = scmp.eq.s32.totalorder %s20, 0
      %p145 = por %p143, %p144
      %p146 = scmp.ne.s32.totalorder %s138, %s140
      %p147 = scmp.eq.s32.totalorder %s25, 1
      %p148 = por %p146, %p147
      %p149 = scmp.ne.s32.totalorder %s140, %s141
      %p150 = scmp.eq.s32.totalorder %s25, 0
      %p151 = por %p149, %p150
      %p152 = scmp.ne.s32.totalorder %s140, %s141
      %p153 = scmp.eq.s32.totalorder %s26, 1
      %p154 = por %p152, %p153
      %p156 = scmp.ne.s32.totalorder %s141, %s155
      %p157 = scmp.eq.s32.totalorder %s26, 0
      %p158 = por %p156, %p157
      %s160 = sadd.s32 %s159, 1
      %p163 = scmp.eq.s32.totalorder %s20, 1
      %p164 = scmp.ne.s32.totalorder %s159, %s161
      %p165 = scmp.eq.s32.totalorder %s20, 0
      %p166 = por %p164, %p165
      %p167 = scmp.ne.s32.totalorder %s159, %s161
      %p168 = scmp.eq.s32.totalorder %s25, 1
      %p169 = por %p167, %p168
      %p170 = scmp.ne.s32.totalorder %s161, %s162
      %p171 = scmp.eq.s32.totalorder %s25, 0
      %p172 = por %p170, %p171
      %p173 = scmp.ne.s32.totalorder %s161, %s162
      %p174 = scmp.eq.s32.totalorder %s26, 1
      %p175 = por %p173, %p174
      %p177 = scmp.ne.s32.totalorder %s162, %s176
      %p178 = scmp.eq.s32.totalorder %s26, 0
      %p179 = por %p177, %p178
      %s180 = ssub.s32 %s20, %s27
      %p181 = scmp.eq.s32.totalorder %s180, 0
      %s183 = sadd.s32 %s182, 1
      %s184 = scalar_select %p181, %s182, %s183
      %p187 = pneg %p181
      %p188 = scmp.eq.s32.totalorder %s20, 1
      %p189 = por %p187, %p188
      %p190 = scmp.ne.s32.totalorder %s182, %s185
      %p191 = scmp.eq.s32.totalorder %s20, 0
      %p192 = por %p190, %p191
      %p193 = scmp.ne.s32.totalorder %s182, %s185
      %p194 = scmp.eq.s32.totalorder %s25, 1
      %p195 = por %p193, %p194
      %p196 = scmp.ne.s32.totalorder %s185, %s186
      %p197 = scmp.eq.s32.totalorder %s25, 0
      %p198 = por %p196, %p197
      %p199 = scmp.ne.s32.totalorder %s185, %s186
      %p200 = scmp.eq.s32.totalorder %s26, 1
      %p201 = por %p199, %p200
      %p203 = scmp.ne.s32.totalorder %s186, %s202
      %p204 = scmp.eq.s32.totalorder %s26, 0
      %p205 = por %p203, %p204
      %p206 = scmp.le.s32.totalorder 1, %s20
      %p207 = scmp.lt.s32.totalorder %s20, 3
      %p208 = pnand %p206, %p207
      %p209 = pneg %p208
      // Predicated region
      $region9: #{tpu_custom_call.1} parent=5 // pred_check
        _
      $region10: #{tpu_custom_call.1} parent=5 // pred_check_branch
        %211 = sbr.rel (%p208) target = $region12
      $region11: #{tpu_custom_call.1} parent=5 // pred_region
        %s212 = ssub.s32 %s20, 1
        // Predicated region
        $region13: #{tpu_custom_call.1} parent=11 // pred_check
          %p213 = pneg %p67
        $region14: #{tpu_custom_call.1} parent=11 // pred_check_branch
          %215 = sbr.rel (%p213) target = $region16
        $region15: #{tpu_custom_call.1} parent=11 // pred_region
          %s217 = ssub.s32 6272, 6272
          %218 = vsyncadd [#allocation6], %s217
          %s219 = sshll.u32 [#allocation5], 4
          %s220 = int_to_ptr.vmem [resolvable:$true] %s219
          %225 = dma.hbm_to_vmem [thread:$0]  %s1, 6272, %s220, [#allocation6], 64, 64, 4
        $region16: #{tpu_custom_call.1} parent=11 // pred_fallthru
          _
        // Predicated region
        $region17: #{tpu_custom_call.1} parent=11 // pred_check
          %p226 = pneg %p88
        $region18: #{tpu_custom_call.1} parent=11 // pred_check_branch
          %228 = sbr.rel (%p226) target = $region20
        $region19: #{tpu_custom_call.1} parent=11 // pred_region
          _
        $region20: #{tpu_custom_call.1} parent=11 // pred_fallthru
          _
        // Predicated region
        $region21: #{tpu_custom_call.1} parent=11 // pred_check
          %p229 = pneg %p109
        $region22: #{tpu_custom_call.1} parent=11 // pred_check_branch
          %231 = sbr.rel (%p229) target = $region24
        $region23: #{tpu_custom_call.1} parent=11 // pred_region
          _
        $region24: #{tpu_custom_call.1} parent=11 // pred_fallthru
          _
        // Predicated region
        $region25: #{tpu_custom_call.1} parent=11 // pred_check
          %p232 = pneg %p130
        $region26: #{tpu_custom_call.1} parent=11 // pred_check_branch
          %234 = sbr.rel (%p232) target = $region28
        $region27: #{tpu_custom_call.1} parent=11 // pred_region
          _
        $region28: #{tpu_custom_call.1} parent=11 // pred_fallthru
          _
        // Predicated region
        $region29: #{tpu_custom_call.1} parent=11 // pred_check
          %p235 = pneg %p151
        $region30: #{tpu_custom_call.1} parent=11 // pred_check_branch
          %237 = sbr.rel (%p235) target = $region32
        $region31: #{tpu_custom_call.1} parent=11 // pred_region
          _
        $region32: #{tpu_custom_call.1} parent=11 // pred_fallthru
          _
        // Predicated region
        $region33: #{tpu_custom_call.1} parent=11 // pred_check
          %p238 = pneg %p172
        $region34: #{tpu_custom_call.1} parent=11 // pred_check_branch
          %240 = sbr.rel (%p238) target = $region36
        $region35: #{tpu_custom_call.1} parent=11 // pred_region
          _
        $region36: #{tpu_custom_call.1} parent=11 // pred_fallthru
          _
      $region12: #{tpu_custom_call.1} parent=5 // pred_fallthru
        _
      %p241 = scmp.lt.s32.totalorder %s20, 2
      // Predicated region
      $region37: #{tpu_custom_call.1} parent=5 // pred_check
        %p242 = pneg %p241
      $region38: #{tpu_custom_call.1} parent=5 // pred_check_branch
        %244 = sbr.rel (%p242) target = $region40
      $region39: #{tpu_custom_call.1} parent=5 // pred_region
        // Predicated region
        $region41: #{tpu_custom_call.1} parent=39 // pred_check
          %p245 = pneg %p40
        $region42: #{tpu_custom_call.1} parent=39 // pred_check_branch
          %247 = sbr.rel (%p245) target = $region44
        $region43: #{tpu_custom_call.1} parent=39 // pred_region
          %s248 = sand.u32 %s30, 1
          %s249 = scalar_lea.sflag [#allocation3], %s248
          %s250 = sand.u32 %s30, 1
          %s251 = smul.addr %s250, 56
          %s252 = scalar_lea.vmem [#allocation2], %s251
          %s254 = ssub.s32 896, 896
          %255 = vsyncadd %s249, %s254
          %s256 = smul.addr %s20, 7
          %s257 = smul.addr %s256, 128
          %s258 = scalar_lea.hbm %s0, %s257
          %s260 = sshll.u32 %s252, 4
          %s261 = int_to_ptr.vmem [resolvable:$true] %s260
          %263 = dma.hbm_to_vmem [thread:$0]  %s258, 896, %s261, %s249
        $region44: #{tpu_custom_call.1} parent=39 // pred_fallthru
          _
      $region40: #{tpu_custom_call.1} parent=5 // pred_fallthru
        _
      %p264 = scmp.le.s32.totalorder 1, %s20
      %p265 = scmp.lt.s32.totalorder %s20, 3
      %p266 = pnand %p264, %p265
      %p267 = pneg %p266
      // Predicated region
      $region45: #{tpu_custom_call.1} parent=5 // pred_check
        _
      $region46: #{tpu_custom_call.1} parent=5 // pred_check_branch
        %269 = sbr.rel (%p266) target = $region48
      $region47: #{tpu_custom_call.1} parent=5 // pred_region
        %s270 = ssub.s32 %s20, 1
        %s271 = sand.u32 %s33, 1
        %s272 = scalar_lea.sflag [#allocation3], %s271
        %s273 = sand.u32 %s33, 1
        %s274 = smul.addr %s273, 56
        %s275 = scalar_lea.vmem [#allocation2], %s274
        // Predicated region
        $region49: #{tpu_custom_call.1} parent=47 // pred_check
          %p276 = pneg %p46
        $region50: #{tpu_custom_call.1} parent=47 // pred_check_branch
          %278 = sbr.rel (%p276) target = $region52
        $region51: #{tpu_custom_call.1} parent=47 // pred_region
          %279 = dma.done %s272, 896
        $region52: #{tpu_custom_call.1} parent=47 // pred_fallthru
          _
        // Predicated region
        $region53: #{tpu_custom_call.1} parent=47 // pred_check
          %p280 = pneg %p67
        $region54: #{tpu_custom_call.1} parent=47 // pred_check_branch
          %282 = sbr.rel (%p280) target = $region56
        $region55: #{tpu_custom_call.1} parent=47 // pred_region
          %283 = dma.done [#allocation6], 6272
        $region56: #{tpu_custom_call.1} parent=47 // pred_fallthru
          _
        %s284 = sand.u32 %s33, 1
        %s285 = scalar_lea.sflag [#allocation3], %s284
        %s286 = sand.u32 %s33, 1
        %s287 = smul.addr %s286, 56
        %s288 = scalar_lea.vmem [#allocation2], %s287
        %p289 = pneg %p46
        %p290 = pneg %p43
        %p291 = pneg %p67
        %p292 = pneg %p64
        %p293 = pneg %p88
        %p294 = pneg %p85
        %p295 = pneg %p109
        %p296 = pneg %p106
        %p297 = pneg %p130
        %p298 = pneg %p127
        %p299 = pneg %p151
        %p300 = pneg %p148
        %p301 = pneg %p172
        %p302 = pneg %p169
        %p303 = pneg %p198
        %p304 = pneg %p195
        %s305 = sand.u32 %s185, 1
        %s306 = scalar_lea.sflag [#allocation4], %s305
        %s307 = sand.u32 %s185, 1
        %s308 = smul.addr %s307, 8
        %s309 = scalar_lea.vmem [#allocation7], %s308
        %v311 = vld [vmem:[%s275] sm:$0xff]
        %v312 = vld [vmem:[%s275 + $0x8] sm:$0xff]
        %v313 = vld [vmem:[%s275 + $0x10] sm:$0xff]
        %v314 = vld [vmem:[%s275 + $0x18] sm:$0xff]
        %v315 = vld [vmem:[%s275 + $0x20] sm:$0xff]
        %v316 = vld [vmem:[%s275 + $0x28] sm:$0xff]
        %v317 = vld [vmem:[%s275 + $0x30] sm:$0xff]
        %v318 = vpack.c.bf16 %v311, %v311
        %v319 = vpack.c.bf16 %v312, %v312
        %v320 = vpack.c.bf16 %v313, %v313
        %v321 = vpack.c.bf16 %v314, %v314
        %v322 = vpack.c.bf16 %v315, %v315
        %v323 = vpack.c.bf16 %v316, %v316
        %v324 = vpack.c.bf16 %v317, %v317
        %v325 = vld [vmem:[#allocation5] sm:$0xf]
        %v326 = vld [vmem:[#allocation5 + $0x4] sm:$0xf]
        %v327 = vld [vmem:[#allocation5 + $0x8] sm:$0xf]
        %v328 = vld [vmem:[#allocation5 + $0xc] sm:$0xf]
        %v329 = vld [vmem:[#allocation5 + $0x10] sm:$0xf]
        %v330 = vld [vmem:[#allocation5 + $0x14] sm:$0xf]
        %v331 = vld [vmem:[#allocation5 + $0x18] sm:$0xf]
        %v332 = vld [vmem:[#allocation5 + $0x1c] sm:$0xf]
        %v333 = vld [vmem:[#allocation5 + $0x20] sm:$0xf]
        %v334 = vld [vmem:[#allocation5 + $0x24] sm:$0xf]
        %v335 = vld [vmem:[#allocation5 + $0x28] sm:$0xf]
        %v336 = vld [vmem:[#allocation5 + $0x2c] sm:$0xf]
        %v337 = vld [vmem:[#allocation5 + $0x30] sm:$0xf]
        %v338 = vld [vmem:[#allocation5 + $0x34] sm:$0xf]
        %v339 = vld [vmem:[#allocation5 + $0x38] sm:$0xf]
        %v340 = vld [vmem:[#allocation5 + $0x3c] sm:$0xf]
        %v341 = vld [vmem:[#allocation5 + $0x40] sm:$0xf]
        %v342 = vld [vmem:[#allocation5 + $0x44] sm:$0xf]
        %v343 = vld [vmem:[#allocation5 + $0x48] sm:$0xf]
        %v344 = vld [vmem:[#allocation5 + $0x4c] sm:$0xf]
        %v345 = vld [vmem:[#allocation5 + $0x50] sm:$0xf]
        %v346 = vld [vmem:[#allocation5 + $0x54] sm:$0xf]
        %v347 = vld [vmem:[#allocation5 + $0x58] sm:$0xf]
        %v348 = vld [vmem:[#allocation5 + $0x5c] sm:$0xf]
        %v349 = vld [vmem:[#allocation5 + $0x60] sm:$0xf]
        %v350 = vld [vmem:[#allocation5 + $0x64] sm:$0xf]
        %v351 = vld [vmem:[#allocation5 + $0x68] sm:$0xf]
        %v352 = vld [vmem:[#allocation5 + $0x6c] sm:$0xf]
        %v353 = vld [vmem:[#allocation5 + $0x70] sm:$0xf]
        %v354 = vld [vmem:[#allocation5 + $0x74] sm:$0xf]
        %v355 = vld [vmem:[#allocation5 + $0x78] sm:$0xf]
        %v356 = vld [vmem:[#allocation5 + $0x7c] sm:$0xf]
        %v357 = vld [vmem:[#allocation5 + $0x80] sm:$0xf]
        %v358 = vld [vmem:[#allocation5 + $0x84] sm:$0xf]
        %v359 = vld [vmem:[#allocation5 + $0x88] sm:$0xf]
        %v360 = vld [vmem:[#allocation5 + $0x8c] sm:$0xf]
        %v361 = vld [vmem:[#allocation5 + $0x90] sm:$0xf]
        %v362 = vld [vmem:[#allocation5 + $0x94] sm:$0xf]
        %v363 = vld [vmem:[#allocation5 + $0x98] sm:$0xf]
        %v364 = vld [vmem:[#allocation5 + $0x9c] sm:$0xf]
        %v365 = vld [vmem:[#allocation5 + $0xa0] sm:$0xf]
        %v366 = vld [vmem:[#allocation5 + $0xa4] sm:$0xf]
        %v367 = vld [vmem:[#allocation5 + $0xa8] sm:$0xf]
        %v368 = vld [vmem:[#allocation5 + $0xac] sm:$0xf]
        %v369 = vld [vmem:[#allocation5 + $0xb0] sm:$0xf]
        %v370 = vld [vmem:[#allocation5 + $0xb4] sm:$0xf]
        %v371 = vld [vmem:[#allocation5 + $0xb8] sm:$0xf]
        %v372 = vld [vmem:[#allocation5 + $0xbc] sm:$0xf]
        %v373 = vld [vmem:[#allocation5 + $0xc0] sm:$0xf]
        %v374 = vld [vmem:[#allocation5 + $0xc4] sm:$0xf]
        %v375 = vld [vmem:[#allocation5 + $0xc8] sm:$0xf]
        %v376 = vld [vmem:[#allocation5 + $0xcc] sm:$0xf]
        %v377 = vld [vmem:[#allocation5 + $0xd0] sm:$0xf]
        %v378 = vld [vmem:[#allocation5 + $0xd4] sm:$0xf]
        %v379 = vld [vmem:[#allocation5 + $0xd8] sm:$0xf]
        %v380 = vld [vmem:[#allocation5 + $0xdc] sm:$0xf]
        %v381 = vld [vmem:[#allocation5 + $0xe0] sm:$0xf]
        %v382 = vld [vmem:[#allocation5 + $0xe4] sm:$0xf]
        %v383 = vld [vmem:[#allocation5 + $0xe8] sm:$0xf]
        %v384 = vld [vmem:[#allocation5 + $0xec] sm:$0xf]
        %v385 = vld [vmem:[#allocation5 + $0xf0] sm:$0xf]
        %v386 = vld [vmem:[#allocation5 + $0xf4] sm:$0xf]
        %v387 = vld [vmem:[#allocation5 + $0xf8] sm:$0xf]
        %v388 = vld [vmem:[#allocation5 + $0xfc] sm:$0xf]
        %v389 = vld [vmem:[#allocation5 + $0x100] sm:$0xf]
        %v390 = vld [vmem:[#allocation5 + $0x104] sm:$0xf]
        %v391 = vld [vmem:[#allocation5 + $0x108] sm:$0xf]
        %v392 = vld [vmem:[#allocation5 + $0x10c] sm:$0xf]
        %v393 = vld [vmem:[#allocation5 + $0x110] sm:$0xf]
        %v394 = vld [vmem:[#allocation5 + $0x114] sm:$0xf]
        %v395 = vld [vmem:[#allocation5 + $0x118] sm:$0xf]
        %v396 = vld [vmem:[#allocation5 + $0x11c] sm:$0xf]
        %v397 = vld [vmem:[#allocation5 + $0x120] sm:$0xf]
        %v398 = vld [vmem:[#allocation5 + $0x124] sm:$0xf]
        %v399 = vld [vmem:[#allocation5 + $0x128] sm:$0xf]
        %v400 = vld [vmem:[#allocation5 + $0x12c] sm:$0xf]
        %v401 = vld [vmem:[#allocation5 + $0x130] sm:$0xf]
        %v402 = vld [vmem:[#allocation5 + $0x134] sm:$0xf]
        %v403 = vld [vmem:[#allocation5 + $0x138] sm:$0xf]
        %v404 = vld [vmem:[#allocation5 + $0x13c] sm:$0xf]
        %v405 = vld [vmem:[#allocation5 + $0x140] sm:$0xf]
        %v406 = vld [vmem:[#allocation5 + $0x144] sm:$0xf]
        %v407 = vld [vmem:[#allocation5 + $0x148] sm:$0xf]
        %v408 = vld [vmem:[#allocation5 + $0x14c] sm:$0xf]
        %v409 = vld [vmem:[#allocation5 + $0x150] sm:$0xf]
        %v410 = vld [vmem:[#allocation5 + $0x154] sm:$0xf]
        %v411 = vld [vmem:[#allocation5 + $0x158] sm:$0xf]
        %v412 = vld [vmem:[#allocation5 + $0x15c] sm:$0xf]
        %v413 = vld [vmem:[#allocation5 + $0x160] sm:$0xf]
        %v414 = vld [vmem:[#allocation5 + $0x164] sm:$0xf]
        %v415 = vld [vmem:[#allocation5 + $0x168] sm:$0xf]
        %v416 = vld [vmem:[#allocation5 + $0x16c] sm:$0xf]
        %v417 = vld [vmem:[#allocation5 + $0x170] sm:$0xf]
        %v418 = vld [vmem:[#allocation5 + $0x174] sm:$0xf]
        %v419 = vld [vmem:[#allocation5 + $0x178] sm:$0xf]
        %v420 = vld [vmem:[#allocation5 + $0x17c] sm:$0xf]
        %v421 = vld [vmem:[#allocation5 + $0x180] sm:$0xf]
        %v422 = vld [vmem:[#allocation5 + $0x184] sm:$0xf]
        %v423 = vld [vmem:[%s2] sm:$0x1]
        %v425 = vlaneseq
        %v426 = vshrl.u32 %v425, 7
        %v427 = vsub.s32 0, %v426
        %v428 = vrot.slane %v423, %v427
        %v528 = vunpack.c.l.b16 %v325
        %v529 = vunpack.c.l.b16 %v326
        %v530 = vunpack.c.l.b16 %v327
        %v531 = vunpack.c.l.b16 %v328
        %v532 = vunpack.c.l.b16 %v329
        %v533 = vunpack.c.l.b16 %v330
        %v534 = vunpack.c.l.b16 %v331
        %v535 = vunpack.c.l.b16 %v332
        %v536 = vunpack.c.l.b16 %v333
        %v537 = vunpack.c.l.b16 %v334
        %v538 = vunpack.c.l.b16 %v335
        %v539 = vunpack.c.l.b16 %v336
        %v540 = vunpack.c.l.b16 %v337
        %v541 = vunpack.c.l.b16 %v338
        %v542 = vunpack.c.l.b16 %v339
        %v543 = vunpack.c.l.b16 %v340
        %v544 = vunpack.c.l.b16 %v341
        %v545 = vunpack.c.l.b16 %v342
        %v546 = vunpack.c.l.b16 %v343
        %v547 = vunpack.c.l.b16 %v344
        %v548 = vunpack.c.l.b16 %v345
        %v549 = vunpack.c.l.b16 %v346
        %v550 = vunpack.c.l.b16 %v347
        %v551 = vunpack.c.l.b16 %v348
        %v552 = vunpack.c.l.b16 %v349
        %v553 = vunpack.c.l.b16 %v350
        %v554 = vunpack.c.l.b16 %v351
        %v555 = vunpack.c.l.b16 %v352
        %v556 = vunpack.c.l.b16 %v353
        %v557 = vunpack.c.l.b16 %v354
        %v558 = vunpack.c.l.b16 %v355
        %v559 = vunpack.c.l.b16 %v356
        %v560 = vunpack.c.l.b16 %v357
        %v561 = vunpack.c.l.b16 %v358
        %v562 = vunpack.c.l.b16 %v359
        %v563 = vunpack.c.l.b16 %v360
        %v564 = vunpack.c.l.b16 %v361
        %v565 = vunpack.c.l.b16 %v362
        %v566 = vunpack.c.l.b16 %v363
        %v567 = vunpack.c.l.b16 %v364
        %v568 = vunpack.c.l.b16 %v365
        %v569 = vunpack.c.l.b16 %v366
        %v570 = vunpack.c.l.b16 %v367
        %v571 = vunpack.c.l.b16 %v368
        %v572 = vunpack.c.l.b16 %v369
        %v573 = vunpack.c.l.b16 %v370
        %v574 = vunpack.c.l.b16 %v371
        %v575 = vunpack.c.l.b16 %v372
        %v576 = vunpack.c.l.b16 %v373
        %v577 = vunpack.c.l.b16 %v374
        %v578 = vunpack.c.l.b16 %v375
        %v579 = vunpack.c.l.b16 %v376
        %v580 = vunpack.c.l.b16 %v377
        %v581 = vunpack.c.l.b16 %v378
        %v582 = vunpack.c.l.b16 %v379
        %v583 = vunpack.c.l.b16 %v380
        %v584 = vunpack.c.l.b16 %v381
        %v585 = vunpack.c.l.b16 %v382
        %v586 = vunpack.c.l.b16 %v383
        %v587 = vunpack.c.l.b16 %v384
        %v588 = vunpack.c.l.b16 %v385
        %v589 = vunpack.c.l.b16 %v386
        %v590 = vunpack.c.l.b16 %v387
        %v591 = vunpack.c.l.b16 %v388
        %v592 = vunpack.c.l.b16 %v389
        %v593 = vunpack.c.l.b16 %v390
        %v594 = vunpack.c.l.b16 %v391
        %v595 = vunpack.c.l.b16 %v392
        %v596 = vunpack.c.l.b16 %v393
        %v597 = vunpack.c.l.b16 %v394
        %v598 = vunpack.c.l.b16 %v395
        %v599 = vunpack.c.l.b16 %v396
        %v600 = vunpack.c.l.b16 %v397
        %v601 = vunpack.c.l.b16 %v398
        %v602 = vunpack.c.l.b16 %v399
        %v603 = vunpack.c.l.b16 %v400
        %v604 = vunpack.c.l.b16 %v401
        %v605 = vunpack.c.l.b16 %v402
        %v606 = vunpack.c.l.b16 %v403
        %v607 = vunpack.c.l.b16 %v404
        %v608 = vunpack.c.l.b16 %v405
        %v609 = vunpack.c.l.b16 %v406
        %v610 = vunpack.c.l.b16 %v407
        %v611 = vunpack.c.l.b16 %v408
        %v612 = vunpack.c.l.b16 %v409
        %v613 = vunpack.c.l.b16 %v410
        %v614 = vunpack.c.l.b16 %v411
        %v615 = vunpack.c.l.b16 %v412
        %v616 = vunpack.c.l.b16 %v413
        %v617 = vunpack.c.l.b16 %v414
        %v618 = vunpack.c.l.b16 %v415
        %v619 = vunpack.c.l.b16 %v416
        %v620 = vunpack.c.l.b16 %v417
        %v621 = vunpack.c.l.b16 %v418
        %v622 = vunpack.c.l.b16 %v419
        %v623 = vunpack.c.l.b16 %v420
        %v624 = vunpack.c.l.b16 %v421
        %v625 = vunpack.c.l.b16 %v422
        %v626 = vpack.c.b16 %v529, %v528
        %v627 = vpack.c.b16 %v531, %v530
        %v628 = vpack.c.b16 %v533, %v532
        %v629 = vpack.c.b16 %v535, %v534
        %v630 = vpack.c.b16 %v537, %v536
        %v631 = vpack.c.b16 %v539, %v538
        %v632 = vpack.c.b16 %v541, %v540
        %v633 = vpack.c.b16 %v543, %v542
        %v634 = vpack.c.b16 %v545, %v544
        %v635 = vpack.c.b16 %v547, %v546
        %v636 = vpack.c.b16 %v549, %v548
        %v637 = vpack.c.b16 %v551, %v550
        %v638 = vpack.c.b16 %v553, %v552
        %v639 = vpack.c.b16 %v555, %v554
        %v640 = vpack.c.b16 %v557, %v556
        %v641 = vpack.c.b16 %v559, %v558
        %v642 = vpack.c.b16 %v561, %v560
        %v643 = vpack.c.b16 %v563, %v562
        %v644 = vpack.c.b16 %v565, %v564
        %v645 = vpack.c.b16 %v567, %v566
        %v646 = vpack.c.b16 %v569, %v568
        %v647 = vpack.c.b16 %v571, %v570
        %v648 = vpack.c.b16 %v573, %v572
        %v649 = vpack.c.b16 %v575, %v574
        %v650 = vpack.c.b16 %v577, %v576
        %v651 = vpack.c.b16 %v579, %v578
        %v652 = vpack.c.b16 %v581, %v580
        %v653 = vpack.c.b16 %v583, %v582
        %v654 = vpack.c.b16 %v585, %v584
        %v655 = vpack.c.b16 %v587, %v586
        %v656 = vpack.c.b16 %v589, %v588
        %v657 = vpack.c.b16 %v591, %v590
        %v658 = vpack.c.b16 %v593, %v592
        %v659 = vpack.c.b16 %v595, %v594
        %v660 = vpack.c.b16 %v597, %v596
        %v661 = vpack.c.b16 %v599, %v598
        %v662 = vpack.c.b16 %v601, %v600
        %v663 = vpack.c.b16 %v603, %v602
        %v664 = vpack.c.b16 %v605, %v604
        %v665 = vpack.c.b16 %v607, %v606
        %v666 = vpack.c.b16 %v609, %v608
        %v667 = vpack.c.b16 %v611, %v610
        %v668 = vpack.c.b16 %v613, %v612
        %v669 = vpack.c.b16 %v615, %v614
        %v670 = vpack.c.b16 %v617, %v616
        %v671 = vpack.c.b16 %v619, %v618
        %v672 = vpack.c.b16 %v621, %v620
        %v673 = vpack.c.b16 %v623, %v622
        %v674 = vpack.c.b16 %v625, %v624
        %vm724 = vcmask 130048
        %v726 = vsel %vm724, %v324, 0
        %728 = vmatprep.subr.bf16.mxu0 0
        %729 = vmatpush1.bf16.msra.mxu0 %v633
        %730 = vmatprep.subr.bf16.mxu0 0
        %731 = vmatpush1.bf16.msra.mxu0 %v632
        %732 = vmatprep.subr.bf16.mxu0 0
        %733 = vmatpush1.bf16.msra.mxu0 %v631
        %734 = vmatprep.subr.bf16.mxu0 0
        %735 = vmatpush1.bf16.msra.mxu0 %v630
        %736 = vmatprep.subr.bf16.mxu0 0
        %737 = vmatpush1.bf16.msra.mxu0 %v629
        %738 = vmatprep.subr.bf16.mxu0 0
        %739 = vmatpush1.bf16.msra.mxu0 %v628
        %740 = vmatprep.subr.bf16.mxu0 0
        %741 = vmatpush1.bf16.msra.mxu0 %v627
        %742 = vmatprep.subr.bf16.mxu0 0
        %743 = vmatpush1.bf16.msra.mxu0 %v626
        %744 = vmatprep.subr.bf16.mxu0 0
        %745 = vmatpush2.bf16.msra.mxu0 %v641
        %746 = vmatprep.subr.bf16.mxu0 0
        %747 = vmatpush2.bf16.msra.mxu0 %v640
        %748 = vmatprep.subr.bf16.mxu0 0
        %749 = vmatpush2.bf16.msra.mxu0 %v639
        %750 = vmatprep.subr.bf16.mxu0 0
        %751 = vmatpush2.bf16.msra.mxu0 %v638
        %752 = vmatprep.subr.bf16.mxu0 0
        %753 = vmatpush2.bf16.msra.mxu0 %v637
        %754 = vmatprep.subr.bf16.mxu0 0
        %755 = vmatpush2.bf16.msra.mxu0 %v636
        %756 = vmatprep.subr.bf16.mxu0 0
        %757 = vmatpush2.bf16.msra.mxu0 %v635
        %758 = vmatprep.subr.bf16.mxu0 0
        %759 = vmatpush2.bf16.msra.mxu0 %v634
        %760 = vmatprep.mubr.bf16.mxu0 %v319
        %761 = vmatmul.mubr.bf16.gmra.mxu0 %v318
        %v762 = vpop.f32.mrf.mxu0
        %v763 = vadd.f32 %v428, %v762
        %v764 = vpop.f32.mrf.mxu0
        %v765 = vpop.f32.mrf.mxu0
        %v766 = vpop.f32.mrf.mxu0
        %767 = vdwg.mxu0
        %768 = vmatprep.subr.bf16.mxu0 0
        %769 = vmatpush1.bf16.msra.mxu0 %v649
        %770 = vmatprep.subr.bf16.mxu0 0
        %771 = vmatpush1.bf16.msra.mxu0 %v648
        %772 = vmatprep.subr.bf16.mxu0 0
        %773 = vmatpush1.bf16.msra.mxu0 %v647
        %774 = vmatprep.subr.bf16.mxu0 0
        %775 = vmatpush1.bf16.msra.mxu0 %v646
        %776 = vmatprep.subr.bf16.mxu0 0
        %777 = vmatpush1.bf16.msra.mxu0 %v645
        %778 = vmatprep.subr.bf16.mxu0 0
        %779 = vmatpush1.bf16.msra.mxu0 %v644
        %780 = vmatprep.subr.bf16.mxu0 0
        %781 = vmatpush1.bf16.msra.mxu0 %v643
        %782 = vmatprep.subr.bf16.mxu0 0
        %783 = vmatpush1.bf16.msra.mxu0 %v642
        %784 = vmatprep.subr.bf16.mxu0 0
        %785 = vmatpush2.bf16.msra.mxu0 %v657
        %786 = vmatprep.subr.bf16.mxu0 0
        %787 = vmatpush2.bf16.msra.mxu0 %v656
        %788 = vmatprep.subr.bf16.mxu0 0
        %789 = vmatpush2.bf16.msra.mxu0 %v655
        %790 = vmatprep.subr.bf16.mxu0 0
        %791 = vmatpush2.bf16.msra.mxu0 %v654
        %792 = vmatprep.subr.bf16.mxu0 0
        %793 = vmatpush2.bf16.msra.mxu0 %v653
        %794 = vmatprep.subr.bf16.mxu0 0
        %795 = vmatpush2.bf16.msra.mxu0 %v652
        %796 = vmatprep.subr.bf16.mxu0 0
        %797 = vmatpush2.bf16.msra.mxu0 %v651
        %798 = vmatprep.subr.bf16.mxu0 0
        %799 = vmatpush2.bf16.msra.mxu0 %v650
        %800 = vmatprep.mubr.bf16.mxu0 %v321
        %801 = vmatmul.mubr.bf16.gmra.mxu0 %v320
        %v802 = vpop.f32.mrf.mxu0
        %v803 = vadd.f32 %v763, %v802
        %v804 = vpop.f32.mrf.mxu0
        %v805 = vpop.f32.mrf.mxu0
        %v806 = vpop.f32.mrf.mxu0
        %807 = vdwg.mxu0
        %808 = vmatprep.subr.bf16.mxu0 0
        %809 = vmatpush1.bf16.msra.mxu0 %v665
        %810 = vmatprep.subr.bf16.mxu0 0
        %811 = vmatpush1.bf16.msra.mxu0 %v664
        %812 = vmatprep.subr.bf16.mxu0 0
        %813 = vmatpush1.bf16.msra.mxu0 %v663
        %814 = vmatprep.subr.bf16.mxu0 0
        %815 = vmatpush1.bf16.msra.mxu0 %v662
        %816 = vmatprep.subr.bf16.mxu0 0
        %817 = vmatpush1.bf16.msra.mxu0 %v661
        %818 = vmatprep.subr.bf16.mxu0 0
        %819 = vmatpush1.bf16.msra.mxu0 %v660
        %820 = vmatprep.subr.bf16.mxu0 0
        %821 = vmatpush1.bf16.msra.mxu0 %v659
        %822 = vmatprep.subr.bf16.mxu0 0
        %823 = vmatpush1.bf16.msra.mxu0 %v658
        %824 = vmatprep.subr.bf16.mxu0 0
        %825 = vmatpush2.bf16.msra.mxu0 %v673
        %826 = vmatprep.subr.bf16.mxu0 0
        %827 = vmatpush2.bf16.msra.mxu0 %v672
        %828 = vmatprep.subr.bf16.mxu0 0
        %829 = vmatpush2.bf16.msra.mxu0 %v671
        %830 = vmatprep.subr.bf16.mxu0 0
        %831 = vmatpush2.bf16.msra.mxu0 %v670
        %832 = vmatprep.subr.bf16.mxu0 0
        %833 = vmatpush2.bf16.msra.mxu0 %v669
        %834 = vmatprep.subr.bf16.mxu0 0
        %835 = vmatpush2.bf16.msra.mxu0 %v668
        %836 = vmatprep.subr.bf16.mxu0 0
        %837 = vmatpush2.bf16.msra.mxu0 %v667
        %838 = vmatprep.subr.bf16.mxu0 0
        %839 = vmatpush2.bf16.msra.mxu0 %v666
        %840 = vmatprep.mubr.bf16.mxu0 %v323
        %841 = vmatmul.mubr.bf16.gmra.mxu0 %v322
        %v842 = vpop.f32.mrf.mxu0
        %v843 = vadd.f32 %v803, %v842
        %v844 = vpop.f32.mrf.mxu0
        %v845 = vpop.f32.mrf.mxu0
        %v846 = vpop.f32.mrf.mxu0
        %847 = vdwg.mxu0
        %848 = vmatprep.subr.bf16.mxu0 0
        %849 = vmatpush1.bf16.msra.mxu0 0
        %850 = vmatprep.subr.bf16.mxu0 0
        %851 = vmatpush1.bf16.msra.mxu0 0
        %852 = vmatprep.subr.bf16.mxu0 0
        %853 = vmatpush1.bf16.msra.mxu0 0
        %854 = vmatprep.subr.bf16.mxu0 0
        %855 = vmatpush1.bf16.msra.mxu0 0
        %856 = vmatprep.subr.bf16.mxu0 0
        %857 = vmatpush1.bf16.msra.mxu0 0
        %858 = vmatprep.subr.bf16.mxu0 0
        %859 = vmatpush1.bf16.msra.mxu0 0
        %860 = vmatprep.subr.bf16.mxu0 0
        %861 = vmatpush1.bf16.msra.mxu0 0
        %862 = vmatprep.subr.bf16.mxu0 0
        %863 = vmatpush1.bf16.msra.mxu0 %v674
        %864 = vmatprep.subr.bf16.mxu0 0
        %865 = vmatpush2.bf16.msra.mxu0 0
        %866 = vmatprep.subr.bf16.mxu0 0
        %867 = vmatpush2.bf16.msra.mxu0 0
        %868 = vmatprep.subr.bf16.mxu0 0
        %869 = vmatpush2.bf16.msra.mxu0 0
        %870 = vmatprep.subr.bf16.mxu0 0
        %871 = vmatpush2.bf16.msra.mxu0 0
        %872 = vmatprep.subr.bf16.mxu0 0
        %873 = vmatpush2.bf16.msra.mxu0 0
        %874 = vmatprep.subr.bf16.mxu0 0
        %875 = vmatpush2.bf16.msra.mxu0 0
        %876 = vmatprep.subr.bf16.mxu0 0
        %877 = vmatpush2.bf16.msra.mxu0 0
        %878 = vmatprep.subr.bf16.mxu0 0
        %879 = vmatpush2.bf16.msra.mxu0 0
        %880 = vmatprep.mubr.bf16.mxu0 0
        %881 = vmatmul.mubr.bf16.gmra.mxu0 %v726
        %v882 = vpop.f32.mrf.mxu0
        %v883 = vadd.f32 %v843, %v882
        %v884 = vpop.f32.mrf.mxu0
        %v885 = vpop.f32.mrf.mxu0
        %v886 = vpop.f32.mrf.mxu0
        %887 = vdwg.mxu0
        %v888 = vmax.f32 %v883, 0.0
        %v889 = vpack.c.bf16 %v888, %v888
        %v890 = vld [vmem:[%s3] sm:$0xf]
        %v891 = vld [vmem:[%s3 + $0x4] sm:$0xf]
        %v892 = vld [vmem:[%s3 + $0x8] sm:$0xf]
        %v893 = vld [vmem:[%s3 + $0xc] sm:$0xf]
        %v894 = vld [vmem:[%s3 + $0x10] sm:$0xf]
        %v895 = vld [vmem:[%s3 + $0x14] sm:$0xf]
        %v896 = vld [vmem:[%s3 + $0x18] sm:$0xf]
        %v897 = vld [vmem:[%s3 + $0x1c] sm:$0xf]
        %v898 = vld [vmem:[%s3 + $0x20] sm:$0xf]
        %v899 = vld [vmem:[%s3 + $0x24] sm:$0xf]
        %v900 = vld [vmem:[%s3 + $0x28] sm:$0xf]
        %v901 = vld [vmem:[%s3 + $0x2c] sm:$0xf]
        %v902 = vld [vmem:[%s3 + $0x30] sm:$0xf]
        %v903 = vld [vmem:[%s3 + $0x34] sm:$0xf]
        %v904 = vld [vmem:[%s3 + $0x38] sm:$0xf]
        %v905 = vld [vmem:[%s3 + $0x3c] sm:$0xf]
        %v906 = vld [vmem:[%s4] sm:$0x1]
        %v908 = vlaneseq
        %v909 = vshrl.u32 %v908, 7
        %v910 = vsub.s32 0, %v909
        %v911 = vrot.slane %v906, %v910
        %v929 = vunpack.c.l.b16 %v890
        %v930 = vunpack.c.l.b16 %v891
        %v931 = vunpack.c.l.b16 %v892
        %v932 = vunpack.c.l.b16 %v893
        %v933 = vunpack.c.l.b16 %v894
        %v934 = vunpack.c.l.b16 %v895
        %v935 = vunpack.c.l.b16 %v896
        %v936 = vunpack.c.l.b16 %v897
        %v937 = vunpack.c.l.b16 %v898
        %v938 = vunpack.c.l.b16 %v899
        %v939 = vunpack.c.l.b16 %v900
        %v940 = vunpack.c.l.b16 %v901
        %v941 = vunpack.c.l.b16 %v902
        %v942 = vunpack.c.l.b16 %v903
        %v943 = vunpack.c.l.b16 %v904
        %v944 = vunpack.c.l.b16 %v905
        %v945 = vpack.c.b16 %v930, %v929
        %v946 = vpack.c.b16 %v932, %v931
        %v947 = vpack.c.b16 %v934, %v933
        %v948 = vpack.c.b16 %v936, %v935
        %v949 = vpack.c.b16 %v938, %v937
        %v950 = vpack.c.b16 %v940, %v939
        %v951 = vpack.c.b16 %v942, %v941
        %v952 = vpack.c.b16 %v944, %v943
        %961 = vmatprep.subr.bf16.mxu0 0
        %962 = vmatpush1.bf16.msra.mxu0 %v952
        %963 = vmatprep.subr.bf16.mxu0 0
        %964 = vmatpush1.bf16.msra.mxu0 %v951
        %965 = vmatprep.subr.bf16.mxu0 0
        %966 = vmatpush1.bf16.msra.mxu0 %v950
        %967 = vmatprep.subr.bf16.mxu0 0
        %968 = vmatpush1.bf16.msra.mxu0 %v949
        %969 = vmatprep.subr.bf16.mxu0 0
        %970 = vmatpush1.bf16.msra.mxu0 %v948
        %971 = vmatprep.subr.bf16.mxu0 0
        %972 = vmatpush1.bf16.msra.mxu0 %v947
        %973 = vmatprep.subr.bf16.mxu0 0
        %974 = vmatpush1.bf16.msra.mxu0 %v946
        %975 = vmatprep.subr.bf16.mxu0 0
        %976 = vmatpush1.bf16.msra.mxu0 %v945
        %977 = vmatprep.subr.bf16.mxu0 0
        %978 = vmatpush2.bf16.msra.mxu0 0
        %979 = vmatprep.subr.bf16.mxu0 0
        %980 = vmatpush2.bf16.msra.mxu0 0
        %981 = vmatprep.subr.bf16.mxu0 0
        %982 = vmatpush2.bf16.msra.mxu0 0
        %983 = vmatprep.subr.bf16.mxu0 0
        %984 = vmatpush2.bf16.msra.mxu0 0
        %985 = vmatprep.subr.bf16.mxu0 0
        %986 = vmatpush2.bf16.msra.mxu0 0
        %987 = vmatprep.subr.bf16.mxu0 0
        %988 = vmatpush2.bf16.msra.mxu0 0
        %989 = vmatprep.subr.bf16.mxu0 0
        %990 = vmatpush2.bf16.msra.mxu0 0
        %991 = vmatprep.subr.bf16.mxu0 0
        %992 = vmatpush2.bf16.msra.mxu0 0
        %993 = vmatprep.mubr.bf16.mxu0 0
        %994 = vmatmul.mubr.bf16.gmra.mxu0 %v889
        %v995 = vpop.f32.mrf.mxu0
        %v996 = vadd.f32 %v911, %v995
        %v997 = vpop.f32.mrf.mxu0
        %v998 = vpop.f32.mrf.mxu0
        %v999 = vpop.f32.mrf.mxu0
        %1000 = vdwg.mxu0
        %v1001 = vmax.f32 %v996, 0.0
        %v1002 = vpack.c.bf16 %v1001, %v1001
        %v1003 = vld [vmem:[%s5] sm:$0xf]
        %v1004 = vld [vmem:[%s5 + $0x4] sm:$0xf]
        %v1005 = vld [vmem:[%s5 + $0x8] sm:$0xf]
        %v1006 = vld [vmem:[%s5 + $0xc] sm:$0xf]
        %v1007 = vld [vmem:[%s5 + $0x10] sm:$0xf]
        %v1008 = vld [vmem:[%s5 + $0x14] sm:$0xf]
        %v1009 = vld [vmem:[%s5 + $0x18] sm:$0xf]
        %v1010 = vld [vmem:[%s5 + $0x1c] sm:$0xf]
        %v1011 = vld [vmem:[%s5 + $0x20] sm:$0xf]
        %v1012 = vld [vmem:[%s5 + $0x24] sm:$0xf]
        %v1013 = vld [vmem:[%s5 + $0x28] sm:$0xf]
        %v1014 = vld [vmem:[%s5 + $0x2c] sm:$0xf]
        %v1015 = vld [vmem:[%s5 + $0x30] sm:$0xf]
        %v1016 = vld [vmem:[%s5 + $0x34] sm:$0xf]
        %v1017 = vld [vmem:[%s5 + $0x38] sm:$0xf]
        %v1018 = vld [vmem:[%s5 + $0x3c] sm:$0xf]
        %v1019 = vld [vmem:[%s6] sm:$0x1]
        %v1021 = vlaneseq
        %v1022 = vshrl.u32 %v1021, 7
        %v1023 = vsub.s32 0, %v1022
        %v1024 = vrot.slane %v1019, %v1023
        %v1042 = vunpack.c.l.b16 %v1003
        %v1043 = vunpack.c.l.b16 %v1004
        %v1044 = vunpack.c.l.b16 %v1005
        %v1045 = vunpack.c.l.b16 %v1006
        %v1046 = vunpack.c.l.b16 %v1007
        %v1047 = vunpack.c.l.b16 %v1008
        %v1048 = vunpack.c.l.b16 %v1009
        %v1049 = vunpack.c.l.b16 %v1010
        %v1050 = vunpack.c.l.b16 %v1011
        %v1051 = vunpack.c.l.b16 %v1012
        %v1052 = vunpack.c.l.b16 %v1013
        %v1053 = vunpack.c.l.b16 %v1014
        %v1054 = vunpack.c.l.b16 %v1015
        %v1055 = vunpack.c.l.b16 %v1016
        %v1056 = vunpack.c.l.b16 %v1017
        %v1057 = vunpack.c.l.b16 %v1018
        %v1058 = vpack.c.b16 %v1043, %v1042
        %v1059 = vpack.c.b16 %v1045, %v1044
        %v1060 = vpack.c.b16 %v1047, %v1046
        %v1061 = vpack.c.b16 %v1049, %v1048
        %v1062 = vpack.c.b16 %v1051, %v1050
        %v1063 = vpack.c.b16 %v1053, %v1052
        %v1064 = vpack.c.b16 %v1055, %v1054
        %v1065 = vpack.c.b16 %v1057, %v1056
        %1074 = vmatprep.subr.bf16.mxu0 0
        %1075 = vmatpush1.bf16.msra.mxu0 %v1065
        %1076 = vmatprep.subr.bf16.mxu0 0
        %1077 = vmatpush1.bf16.msra.mxu0 %v1064
        %1078 = vmatprep.subr.bf16.mxu0 0
        %1079 = vmatpush1.bf16.msra.mxu0 %v1063
        %1080 = vmatprep.subr.bf16.mxu0 0
        %1081 = vmatpush1.bf16.msra.mxu0 %v1062
        %1082 = vmatprep.subr.bf16.mxu0 0
        %1083 = vmatpush1.bf16.msra.mxu0 %v1061
        %1084 = vmatprep.subr.bf16.mxu0 0
        %1085 = vmatpush1.bf16.msra.mxu0 %v1060
        %1086 = vmatprep.subr.bf16.mxu0 0
        %1087 = vmatpush1.bf16.msra.mxu0 %v1059
        %1088 = vmatprep.subr.bf16.mxu0 0
        %1089 = vmatpush1.bf16.msra.mxu0 %v1058
        %1090 = vmatprep.subr.bf16.mxu0 0
        %1091 = vmatpush2.bf16.msra.mxu0 0
        %1092 = vmatprep.subr.bf16.mxu0 0
        %1093 = vmatpush2.bf16.msra.mxu0 0
        %1094 = vmatprep.subr.bf16.mxu0 0
        %1095 = vmatpush2.bf16.msra.mxu0 0
        %1096 = vmatprep.subr.bf16.mxu0 0
        %1097 = vmatpush2.bf16.msra.mxu0 0
        %1098 = vmatprep.subr.bf16.mxu0 0
        %1099 = vmatpush2.bf16.msra.mxu0 0
        %1100 = vmatprep.subr.bf16.mxu0 0
        %1101 = vmatpush2.bf16.msra.mxu0 0
        %1102 = vmatprep.subr.bf16.mxu0 0
        %1103 = vmatpush2.bf16.msra.mxu0 0
        %1104 = vmatprep.subr.bf16.mxu0 0
        %1105 = vmatpush2.bf16.msra.mxu0 0
        %1106 = vmatprep.mubr.bf16.mxu0 0
        %1107 = vmatmul.mubr.bf16.gmra.mxu0 %v1002
        %v1108 = vpop.f32.mrf.mxu0
        %v1109 = vadd.f32 %v1024, %v1108
        %v1110 = vpop.f32.mrf.mxu0
        %v1111 = vpop.f32.mrf.mxu0
        %v1112 = vpop.f32.mrf.mxu0
        %1113 = vdwg.mxu0
        %1114 = vst.msk [vmem:[%s309] sm:$0xff] %vm724, %v1109
        %s1115 = sand.u32 %s185, 1
        %s1116 = scalar_lea.sflag [#allocation4], %s1115
        %s1117 = sand.u32 %s185, 1
        %s1118 = smul.addr %s1117, 8
        %s1119 = scalar_lea.vmem [#allocation7], %s1118
        // Predicated region
        $region57: #{tpu_custom_call.1} parent=47 // pred_check
          %p1120 = pneg %p195
        $region58: #{tpu_custom_call.1} parent=47 // pred_check_branch
          %1122 = sbr.rel (%p1120) target = $region60
        $region59: #{tpu_custom_call.1} parent=47 // pred_region
          %s1124 = ssub.s32 128, 128
          %1125 = vsyncadd %s1116, %s1124
          %s1126 = smul.addr %s25, 128
          %s1127 = scalar_lea.hbm %s7, %s1126
          %s1129 = sshll.u32 %s1119, 4
          %s1130 = int_to_ptr.vmem [resolvable:$true] %s1129
          %1132 = dma.vmem_to_hbm [thread:$0]  %s1130, 128, %s1127, %s1116
        $region60: #{tpu_custom_call.1} parent=47 // pred_fallthru
          _
      $region48: #{tpu_custom_call.1} parent=5 // pred_fallthru
        _
      %p1133 = scmp.le.s32.totalorder 2, %s20
      // Predicated region
      $region61: #{tpu_custom_call.1} parent=5 // pred_check
        %p1134 = pneg %p1133
      $region62: #{tpu_custom_call.1} parent=5 // pred_check_branch
        %1136 = sbr.rel (%p1134) target = $region64
      $region63: #{tpu_custom_call.1} parent=5 // pred_region
        %s1137 = ssub.s32 %s20, 2
        // Predicated region
        $region65: #{tpu_custom_call.1} parent=63 // pred_check
          %p1138 = pneg %p201
        $region66: #{tpu_custom_call.1} parent=63 // pred_check_branch
          %1140 = sbr.rel (%p1138) target = $region68
        $region67: #{tpu_custom_call.1} parent=63 // pred_region
          %s1141 = sand.u32 %s186, 1
          %s1142 = scalar_lea.sflag [#allocation4], %s1141
          %s1143 = sand.u32 %s186, 1
          %s1144 = smul.addr %s1143, 8
          %s1145 = scalar_lea.vmem [#allocation7], %s1144
          %1146 = dma.done %s1142, 128
        $region68: #{tpu_custom_call.1} parent=63 // pred_fallthru
          _
      $region64: #{tpu_custom_call.1} parent=5 // pred_fallthru
        _
    $region6: #{tpu_custom_call.1} parent=1 // loop_footer
      %s24 = sadd.s32 1, %s20
    $region7: #{tpu_custom_call.1} parent=1 // loop_footer_branch
      %19 = sbr.rel target = $region3
    $region8: #{tpu_custom_call.1} parent=1 // loop_exit
      _
    %1147 = vsyncpa [#allocation3], 1
    %s1148 = scalar_lea.sflag [#allocation3], 1
    %1149 = vsyncpa %s1148, 1
    %1150 = vsyncpa [#allocation6], 1
    %1151 = vsyncpa [#allocation4], 1
    %s1152 = scalar_lea.sflag [#allocation4], 1
    %1153 = vsyncpa %s1152, 1

</llo_original>
